<compile_context>
chip_gen: v6e
topology: v6e:2x2x1
jax: 0.10.0
libtpu: 0.0.40
codegen_flags: <defaults>
</compile_context>

<pallas_src>
import functools

import jax
import jax.numpy as jnp
from jax.experimental import pallas as pl
from jax.experimental.pallas import tpu as pltpu


# ---------------------------------------------------------------------------
# Fused attention kernel (QKV proj + softmax + head-merge + output proj)
# ---------------------------------------------------------------------------
def _attn_fused_kernel(x_ref, wqkv_ref, wproj_ref, bproj_ref,
                       o_ref, amap_ref, acc_ref, *, num_heads, head_dim):
    h = pl.program_id(1)
    hd = head_dim

    # --- per-head fused QKV projection: one wide matmul, bf16 in / f32 acc ---
    x = x_ref[0].astype(jnp.bfloat16)                             # (N, C)
    qkv = jnp.dot(x, wqkv_ref[0],
                  preferred_element_type=jnp.float32)             # (N, 3*hd)
    q = qkv[:, 0 * hd:1 * hd].astype(jnp.bfloat16)                # scale folded in Wq
    k = qkv[:, 1 * hd:2 * hd].astype(jnp.bfloat16)
    v = qkv[:, 2 * hd:3 * hd].astype(jnp.bfloat16)

    # --- scaled dot-product attention; softmax math kept in f32 ---
    s = jax.lax.dot_general(q, k, (((1,), (1,)), ((), ())),
                            preferred_element_type=jnp.float32)   # (N, N)
    s = s - jnp.max(s, axis=-1, keepdims=True)
    p = jnp.exp(s)
    inv = pl.reciprocal(jnp.sum(p, axis=-1, keepdims=True), approx=True)  # EUP
    attn = p * inv                                                # (N, N) f32

    # --- mean-over-heads attention map: accumulate raw, scale once at the end ---
    @pl.when(h == 0)
    def _():
        amap_ref[0] = attn

    @pl.when(h > 0)
    def _():
        amap_ref[0] = amap_ref[0] + attn

    # --- fused head-merge + output projection into (N, C) f32 accumulator ---
    o_h = jnp.dot(attn.astype(jnp.bfloat16), v,
                  preferred_element_type=jnp.float32)             # (N, hd)
    head_out = jnp.dot(o_h.astype(jnp.bfloat16), wproj_ref[0],
                       preferred_element_type=jnp.float32)        # (N, C)

    @pl.when(h == 0)
    def _():
        acc_ref[...] = head_out

    @pl.when(h > 0)
    def _():
        acc_ref[...] = acc_ref[...] + head_out

    # --- finalize: one lane-dense (N, C) store + bias; 1/H scale on attn map ---
    @pl.when(h == num_heads - 1)
    def _():
        amap_ref[0] = amap_ref[0] * (1.0 / num_heads)
        o_ref[0] = (acc_ref[...] + bproj_ref[...]).astype(o_ref.dtype)


# ---------------------------------------------------------------------------
# Wrapper
# ---------------------------------------------------------------------------
def attention_forward(x, w_qkv_t, w_proj_t, b_proj, num_heads):
    """x: (B, N, C) f32. w_qkv_t: (C, 3C). w_proj_t: (C, C). b_proj: (C,)."""
    B, N, C = x.shape
    assert C % num_heads == 0
    hd = C // num_heads
    scale = hd ** (-0.5)

    # Trace-time weight prep: fold softmax scale into Wq, permute to per-head
    # [q_h | k_h | v_h] column layout, cast matmul operands to bf16.
    wq = (w_qkv_t[:, 0 * C:1 * C] * scale).reshape(C, num_heads, hd)
    wk = w_qkv_t[:, 1 * C:2 * C].reshape(C, num_heads, hd)
    wv = w_qkv_t[:, 2 * C:3 * C].reshape(C, num_heads, hd)
    w_qkv_heads = (jnp.stack([wq, wk, wv], axis=2)        # (C, H, 3, hd)
                   .transpose(1, 0, 2, 3)                 # (H, C, 3, hd)
                   .reshape(num_heads, C, 3 * hd)
                   .astype(jnp.bfloat16))
    w_proj_heads = w_proj_t.reshape(num_heads, hd, C).astype(jnp.bfloat16)
    b2 = b_proj.reshape(1, C).astype(jnp.float32)

    kernel = functools.partial(_attn_fused_kernel,
                               num_heads=num_heads, head_dim=hd)

    # TODO(synk): for large DiT sequence lengths on v7x (64 MiB VMEM) add a
    # query-tile grid axis so the (N, N) score / attn_map blocks stay bounded.
    out, attn_map = pl.pallas_call(
        kernel,
        out_shape=(
            jax.ShapeDtypeStruct((B, N, C), x.dtype),
            jax.ShapeDtypeStruct((B, N, N), jnp.float32),
        ),
        grid_spec=pltpu.PrefetchScalarGridSpec(
            num_scalar_prefetch=0,
            grid=(B, num_heads),
            in_specs=[
                pl.BlockSpec((1, N, C), lambda b, h: (b, 0, 0)),        # x
                pl.BlockSpec((1, C, 3 * hd), lambda b, h: (h, 0, 0)),   # qkv W (per head)
                pl.BlockSpec((1, hd, C), lambda b, h: (h, 0, 0)),       # proj W (per head)
                pl.BlockSpec((1, C), lambda b, h: (0, 0)),              # proj bias
            ],
            out_specs=[
                pl.BlockSpec((1, N, C), lambda b, h: (b, 0, 0)),        # output (resident over h)
                pl.BlockSpec((1, N, N), lambda b, h: (b, 0, 0)),        # attn map (resident over h)
            ],
            scratch_shapes=[pltpu.VMEM((N, C), jnp.float32)],           # projected-output accumulator
        ),
        compiler_params=pltpu.CompilerParams(
            dimension_semantics=("parallel", "arbitrary"),
            vmem_limit_bytes=64 * 1024 * 1024,
        ),
    )(x, w_qkv_heads, w_proj_heads, b2)

    return out, attn_map


# ---------------------------------------------------------------------------
# Pure-JAX reference (mirrors the PyTorch forward, full f32)
# ---------------------------------------------------------------------------
def attention_reference(x, w_qkv_t, w_proj_t, b_proj, num_heads):
    B, N, C = x.shape
    hd = C // num_heads
    scale = hd ** (-0.5)
    qkv = (x @ w_qkv_t).reshape(B, N, 3, num_heads, hd).transpose(2, 0, 3, 1, 4)
    q, k, v = qkv[0], qkv[1], qkv[2]              # (B, H, N, hd)
    attn = (q * scale) @ jnp.swapaxes(k, -2, -1)  # (B, H, N, N)
    attn = jax.nn.softmax(attn, axis=-1)
    o = attn @ v                                  # (B, H, N, hd)
    o = o.transpose(0, 2, 1, 3).reshape(B, N, C)
    out = o @ w_proj_t + b_proj
    return out, attn.mean(axis=1)


if __name__ == "__main__":
    B, N, C = 2, 16, 64
    num_heads = 8

    key = jax.random.PRNGKey(0)
    kx, kq, kp, kb = jax.random.split(key, 4)

    x = jax.random.normal(kx, (B, N, C), dtype=jnp.float32)
    # weights stored transposed: (in_features, out_features)
    w_qkv_t = 0.05 * jax.random.normal(kq, (C, 3 * C), dtype=jnp.float32)
    w_proj_t = 0.05 * jax.random.normal(kp, (C, C), dtype=jnp.float32)
    b_proj = 0.05 * jax.random.normal(kb, (C,), dtype=jnp.float32)

    out, attn_map = attention_forward(x, w_qkv_t, w_proj_t, b_proj, num_heads)
    out = jax.block_until_ready(out)
    attn_map = jax.block_until_ready(attn_map)

    ref_out, ref_map = attention_reference(x, w_qkv_t, w_proj_t, b_proj, num_heads)

    assert out.shape == (B, N, C) and attn_map.shape == (B, N, N)
    # bf16 matmul inputs (f32 accumulation) -> loosened tolerances vs f32 reference
    assert jnp.allclose(out, ref_out, atol=3e-2, rtol=3e-2), "output mismatch"
    assert jnp.allclose(attn_map, ref_map, atol=3e-3, rtol=1e-2), "attn_map mismatch"

    # TODO(synk): fresh_indices / KV-cache scatter path (gather + in-place cache
    # update) is stateful torch-side bookkeeping and is not implemented here.
    print("KERNEL_OK")
</pallas_src>

<mosaic_0001>
module attributes {stable_mosaic.version = 11 : i64} {
  func.func @_attn_fused_kernel(%arg0: i32, %arg1: i32, %arg2: memref<1x16x64xf32, #tpu.memory_space<vmem>>, %arg3: memref<1x64x24xbf16, #tpu.memory_space<vmem>>, %arg4: memref<1x8x64xbf16, #tpu.memory_space<vmem>>, %arg5: memref<1x64xf32, #tpu.memory_space<vmem>>, %arg6: memref<1x16x64xf32, #tpu.memory_space<vmem>>, %arg7: memref<1x16x16xf32, #tpu.memory_space<vmem>>, %arg8: memref<16x64xf32, #tpu.memory_space<vmem>>) attributes {dimension_semantics = [#tpu.dimension_semantics<parallel>, #tpu.dimension_semantics<arbitrary>], iteration_bounds = array<i64: 2, 8>, scalar_prefetch = 0 : i64, scratch_operands = 1 : i64, tpu.core_type = #tpu.core_type<tc>, window_params = [{transform_indices = @transform_0, window_bounds = array<i64: 1, 16, 64>}, {transform_indices = @transform_1, window_bounds = array<i64: 1, 64, 24>}, {transform_indices = @transform_2, window_bounds = array<i64: 1, 8, 64>}, {pipeline_mode = #tpu.pipeline_mode<synchronous>, transform_indices = @transform_3, window_bounds = array<i64: 1, 64>}, {transform_indices = @transform_4, window_bounds = array<i64: 1, 16, 64>}, {transform_indices = @transform_5, window_bounds = array<i64: 1, 16, 16>}]} {
    %c0 = arith.constant 0 : index
    %c0_0 = arith.constant 0 : index
    %c0_1 = arith.constant 0 : index
    %0 = vector.load %arg2[%c0, %c0_0, %c0_1] : memref<1x16x64xf32, #tpu.memory_space<vmem>>, vector<1x16x64xf32>
    %1 = vector.shape_cast %0 : vector<1x16x64xf32> to vector<16x64xf32>
    %2 = arith.truncf %1 : vector<16x64xf32> to vector<16x64xbf16>
    %c0_2 = arith.constant 0 : index
    %c0_3 = arith.constant 0 : index
    %c0_4 = arith.constant 0 : index
    %3 = vector.load %arg3[%c0_2, %c0_3, %c0_4] : memref<1x64x24xbf16, #tpu.memory_space<vmem>>, vector<1x64x24xbf16>
    %4 = vector.shape_cast %3 : vector<1x64x24xbf16> to vector<64x24xbf16>
    %cst = arith.constant dense<0.000000e+00> : vector<16x24xf32>
    %5 = tpu.matmul %2, %4, %cst {dimension_numbers = #tpu.dot_dimension_numbers<[1], [0], [0], [1], [0, 0, 1, 1], [], []>} : vector<16x64xbf16>, vector<64x24xbf16>, vector<16x24xf32> -> vector<16x24xf32>
    %6 = vector.extract_strided_slice %5 {offsets = [0, 0], sizes = [16, 8], strides = [1, 1]} : vector<16x24xf32> to vector<16x8xf32>
    %7 = arith.truncf %6 : vector<16x8xf32> to vector<16x8xbf16>
    %8 = vector.extract_strided_slice %5 {offsets = [0, 8], sizes = [16, 8], strides = [1, 1]} : vector<16x24xf32> to vector<16x8xf32>
    %9 = arith.truncf %8 : vector<16x8xf32> to vector<16x8xbf16>
    %10 = vector.extract_strided_slice %5 {offsets = [0, 16], sizes = [16, 8], strides = [1, 1]} : vector<16x24xf32> to vector<16x8xf32>
    %11 = arith.truncf %10 : vector<16x8xf32> to vector<16x8xbf16>
    %cst_5 = arith.constant dense<0.000000e+00> : vector<16x16xf32>
    %12 = tpu.matmul %7, %9, %cst_5 {dimension_numbers = #tpu.dot_dimension_numbers<[1], [1], [0], [0], [0, 0, 1, 0], [], []>} : vector<16x8xbf16>, vector<16x8xbf16>, vector<16x16xf32> -> vector<16x16xf32>
    %cst_6 = arith.constant dense<0xFF800000> : vector<16xf32>
    %13 = vector.multi_reduction <maximumf>, %12, %cst_6 [1] : vector<16x16xf32> to vector<16xf32>
    %14 = vector.shape_cast %13 : vector<16xf32> to vector<16x1xf32>
    %15 = vector.broadcast %14 : vector<16x1xf32> to vector<16x16xf32>
    %16 = arith.subf %12, %15 : vector<16x16xf32>
    %17 = math.exp %16 : vector<16x16xf32>
    %cst_7 = arith.constant dense<0.000000e+00> : vector<16xf32>
    %18 = vector.multi_reduction <add>, %17, %cst_7 [1] : vector<16x16xf32> to vector<16xf32>
    %19 = vector.shape_cast %18 : vector<16xf32> to vector<16x1xf32>
    %20 = tpu.reciprocal %19 {approx = true} : vector<16x1xf32> -> vector<16x1xf32>
    %21 = vector.broadcast %20 : vector<16x1xf32> to vector<16x16xf32>
    %22 = arith.mulf %17, %21 : vector<16x16xf32>
    %c0_i32 = arith.constant 0 : i32
    %23 = arith.cmpi eq, %arg1, %c0_i32 : i32
    %24 = arith.extui %23 : i1 to i32
    %c0_i32_8 = arith.constant 0 : i32
    %25 = arith.cmpi ne, %24, %c0_i32_8 : i32
    scf.if %25 {
      %c0_21 = arith.constant 0 : index
      %c0_22 = arith.constant 0 : index
      %c0_23 = arith.constant 0 : index
      %44 = vector.load %arg7[%c0_21, %c0_22, %c0_23] : memref<1x16x16xf32, #tpu.memory_space<vmem>>, vector<1x16x16xf32>
      %45 = vector.shape_cast %44 : vector<1x16x16xf32> to vector<16x16xf32>
      %46 = vector.shape_cast %22 : vector<16x16xf32> to vector<1x16x16xf32>
      tpu.vector_store %arg7[%c0_21, %c0_22, %c0_23], %46 {strides = array<i32>} : memref<1x16x16xf32, #tpu.memory_space<vmem>>, vector<1x16x16xf32>,
    } else {
    }
    %c0_i32_9 = arith.constant 0 : i32
    %26 = arith.cmpi sgt, %arg1, %c0_i32_9 : i32
    %27 = arith.extui %26 : i1 to i32
    %c0_i32_10 = arith.constant 0 : i32
    %28 = arith.cmpi ne, %27, %c0_i32_10 : i32
    scf.if %28 {
      %c0_21 = arith.constant 0 : index
      %c0_22 = arith.constant 0 : index
      %c0_23 = arith.constant 0 : index
      %44 = vector.load %arg7[%c0_21, %c0_22, %c0_23] : memref<1x16x16xf32, #tpu.memory_space<vmem>>, vector<1x16x16xf32>
      %45 = vector.shape_cast %44 : vector<1x16x16xf32> to vector<16x16xf32>
      %46 = arith.addf %45, %22 : vector<16x16xf32>
      %c0_24 = arith.constant 0 : index
      %c0_25 = arith.constant 0 : index
      %c0_26 = arith.constant 0 : index
      %47 = vector.load %arg7[%c0_24, %c0_25, %c0_26] : memref<1x16x16xf32, #tpu.memory_space<vmem>>, vector<1x16x16xf32>
      %48 = vector.shape_cast %47 : vector<1x16x16xf32> to vector<16x16xf32>
      %49 = vector.shape_cast %46 : vector<16x16xf32> to vector<1x16x16xf32>
      tpu.vector_store %arg7[%c0_24, %c0_25, %c0_26], %49 {strides = array<i32>} : memref<1x16x16xf32, #tpu.memory_space<vmem>>, vector<1x16x16xf32>,
    } else {
    }
    %29 = arith.truncf %22 : vector<16x16xf32> to vector<16x16xbf16>
    %cst_11 = arith.constant dense<0.000000e+00> : vector<16x8xf32>
    %30 = tpu.matmul %29, %11, %cst_11 {dimension_numbers = #tpu.dot_dimension_numbers<[1], [0], [0], [1], [0, 0, 1, 1], [], []>} : vector<16x16xbf16>, vector<16x8xbf16>, vector<16x8xf32> -> vector<16x8xf32>
    %31 = arith.truncf %30 : vector<16x8xf32> to vector<16x8xbf16>
    %c0_12 = arith.constant 0 : index
    %c0_13 = arith.constant 0 : index
    %c0_14 = arith.constant 0 : index
    %32 = vector.load %arg4[%c0_12, %c0_13, %c0_14] : memref<1x8x64xbf16, #tpu.memory_space<vmem>>, vector<1x8x64xbf16>
    %33 = vector.shape_cast %32 : vector<1x8x64xbf16> to vector<8x64xbf16>
    %cst_15 = arith.constant dense<0.000000e+00> : vector<16x64xf32>
    %34 = tpu.matmul %31, %33, %cst_15 {dimension_numbers = #tpu.dot_dimension_numbers<[1], [0], [0], [1], [0, 0, 1, 1], [], []>} : vector<16x8xbf16>, vector<8x64xbf16>, vector<16x64xf32> -> vector<16x64xf32>
    %c0_i32_16 = arith.constant 0 : i32
    %35 = arith.cmpi eq, %arg1, %c0_i32_16 : i32
    %36 = arith.extui %35 : i1 to i32
    %c0_i32_17 = arith.constant 0 : i32
    %37 = arith.cmpi ne, %36, %c0_i32_17 : i32
    scf.if %37 {
      %c0_21 = arith.constant 0 : index
      %c0_22 = arith.constant 0 : index
      %44 = vector.load %arg8[%c0_21, %c0_22] : memref<16x64xf32, #tpu.memory_space<vmem>>, vector<16x64xf32>
      tpu.vector_store %arg8[%c0_21, %c0_22], %34 {strides = array<i32>} : memref<16x64xf32, #tpu.memory_space<vmem>>, vector<16x64xf32>,
    } else {
    }
    %c0_i32_18 = arith.constant 0 : i32
    %38 = arith.cmpi sgt, %arg1, %c0_i32_18 : i32
    %39 = arith.extui %38 : i1 to i32
    %c0_i32_19 = arith.constant 0 : i32
    %40 = arith.cmpi ne, %39, %c0_i32_19 : i32
    scf.if %40 {
      %c0_21 = arith.constant 0 : index
      %c0_22 = arith.constant 0 : index
      %44 = vector.load %arg8[%c0_21, %c0_22] : memref<16x64xf32, #tpu.memory_space<vmem>>, vector<16x64xf32>
      %45 = arith.addf %44, %34 : vector<16x64xf32>
      %c0_23 = arith.constant 0 : index
      %c0_24 = arith.constant 0 : index
      %46 = vector.load %arg8[%c0_23, %c0_24] : memref<16x64xf32, #tpu.memory_space<vmem>>, vector<16x64xf32>
      tpu.vector_store %arg8[%c0_23, %c0_24], %45 {strides = array<i32>} : memref<16x64xf32, #tpu.memory_space<vmem>>, vector<16x64xf32>,
    } else {
    }
    %c7_i32 = arith.constant 7 : i32
    %41 = arith.cmpi eq, %arg1, %c7_i32 : i32
    %42 = arith.extui %41 : i1 to i32
    %c0_i32_20 = arith.constant 0 : i32
    %43 = arith.cmpi ne, %42, %c0_i32_20 : i32
    scf.if %43 {
      %c0_21 = arith.constant 0 : index
      %c0_22 = arith.constant 0 : index
      %c0_23 = arith.constant 0 : index
      %44 = vector.load %arg7[%c0_21, %c0_22, %c0_23] : memref<1x16x16xf32, #tpu.memory_space<vmem>>, vector<1x16x16xf32>
      %45 = vector.shape_cast %44 : vector<1x16x16xf32> to vector<16x16xf32>
      %cst_24 = arith.constant 1.250000e-01 : f32
      %46 = vector.broadcast %cst_24 : f32 to vector<16x16xf32>
      %47 = arith.mulf %45, %46 : vector<16x16xf32>
      %c0_25 = arith.constant 0 : index
      %c0_26 = arith.constant 0 : index
      %c0_27 = arith.constant 0 : index
      %48 = vector.load %arg7[%c0_25, %c0_26, %c0_27] : memref<1x16x16xf32, #tpu.memory_space<vmem>>, vector<1x16x16xf32>
      %49 = vector.shape_cast %48 : vector<1x16x16xf32> to vector<16x16xf32>
      %50 = vector.shape_cast %47 : vector<16x16xf32> to vector<1x16x16xf32>
      tpu.vector_store %arg7[%c0_25, %c0_26, %c0_27], %50 {strides = array<i32>} : memref<1x16x16xf32, #tpu.memory_space<vmem>>, vector<1x16x16xf32>,
      %c0_28 = arith.constant 0 : index
      %c0_29 = arith.constant 0 : index
      %51 = vector.load %arg8[%c0_28, %c0_29] : memref<16x64xf32, #tpu.memory_space<vmem>>, vector<16x64xf32>
      %c0_30 = arith.constant 0 : index
      %c0_31 = arith.constant 0 : index
      %52 = vector.load %arg5[%c0_30, %c0_31] : memref<1x64xf32, #tpu.memory_space<vmem>>, vector<1x64xf32>
      %53 = vector.broadcast %52 : vector<1x64xf32> to vector<16x64xf32>
      %54 = arith.addf %51, %53 : vector<16x64xf32>
      %c0_32 = arith.constant 0 : index
      %c0_33 = arith.constant 0 : index
      %c0_34 = arith.constant 0 : index
      %55 = vector.load %arg6[%c0_32, %c0_33, %c0_34] : memref<1x16x64xf32, #tpu.memory_space<vmem>>, vector<1x16x64xf32>
      %56 = vector.shape_cast %55 : vector<1x16x64xf32> to vector<16x64xf32>
      %57 = vector.shape_cast %54 : vector<16x64xf32> to vector<1x16x64xf32>
      tpu.vector_store %arg6[%c0_32, %c0_33, %c0_34], %57 {strides = array<i32>} : memref<1x16x64xf32, #tpu.memory_space<vmem>>, vector<1x16x64xf32>,
    } else {
    }
    return
  }
  func.func @transform_0(%arg0: i32, %arg1: i32) -> (i32, i32, i32) {
    %c0_i32 = arith.constant 0 : i32
    %c0_i32_0 = arith.constant 0 : i32
    %c0_i32_1 = arith.constant 0 : i32
    return %arg0, %c0_i32, %c0_i32_0 : i32, i32, i32
  }
  func.func @transform_1(%arg0: i32, %arg1: i32) -> (i32, i32, i32) {
    %c0_i32 = arith.constant 0 : i32
    %c0_i32_0 = arith.constant 0 : i32
    %c0_i32_1 = arith.constant 0 : i32
    return %arg1, %c0_i32, %c0_i32_0 : i32, i32, i32
  }
  func.func @transform_2(%arg0: i32, %arg1: i32) -> (i32, i32, i32) {
    %c0_i32 = arith.constant 0 : i32
    %c0_i32_0 = arith.constant 0 : i32
    %c0_i32_1 = arith.constant 0 : i32
    return %arg1, %c0_i32, %c0_i32_0 : i32, i32, i32
  }
  func.func @transform_3(%arg0: i32, %arg1: i32) -> (i32, i32) {
    %c0_i32 = arith.constant 0 : i32
    %c0_i32_0 = arith.constant 0 : i32
    %c0_i32_1 = arith.constant 0 : i32
    return %c0_i32, %c0_i32_0 : i32, i32
  }
  func.func @transform_4(%arg0: i32, %arg1: i32) -> (i32, i32, i32) {
    %c0_i32 = arith.constant 0 : i32
    %c0_i32_0 = arith.constant 0 : i32
    %c0_i32_1 = arith.constant 0 : i32
    return %arg0, %c0_i32, %c0_i32_0 : i32, i32, i32
  }
  func.func @transform_5(%arg0: i32, %arg1: i32) -> (i32, i32, i32) {
    %c0_i32 = arith.constant 0 : i32
    %c0_i32_0 = arith.constant 0 : i32
    %c0_i32_1 = arith.constant 0 : i32
    return %arg0, %c0_i32, %c0_i32_0 : i32, i32, i32
  }
}

</mosaic_0001>

<llo_original>
// kernel: tpu_custom_call.1
$region0: #{tpu_custom_call.1}
  #allocation0 [shape = 'u32[]', space=smem, size = 0x4, offset = 0x4, fixed_abs, tag = 'smem constant byte address 0x4 - core index']
  #allocation1 [shape = 'u32[144,128]{1,0:T(1,128)}', space=vmem, size = 0x12000, scoped, tag = 'internal scratch']
  #allocation2 [shape = 'f32[16,64]{1,0:T(8,128)}', space=vmem, size = 0x2000, scoped, tag = 'scratch operand']
  %s0 = inlined_call_operand.vmem [shape: f32[2,16,64], index: 0, kind: input, shape index: {}]
  %s1 = inlined_call_operand.vmem [shape: bf16[8,64,24], index: 1, kind: input, shape index: {}]
  %s2 = inlined_call_operand.vmem [shape: bf16[8,8,64], index: 2, kind: input, shape index: {}]
  %s3 = inlined_call_operand.vmem [shape: f32[1,64], index: 3, kind: input, shape index: {}]
  %s4 = inlined_call_operand.hbm [shape: f32[2,16,64], index: 4, kind: output, shape index: {0}]
  %s5 = inlined_call_operand.hbm [shape: f32[2,16,16], index: 5, kind: output, shape index: {1}]
  %6 = xla_tuple %s4, %s5
  %s7 = sld [smem:[#allocation0]]
  $region77: #{tpu_custom_call.1} parent=0
    _
  %s9 = ssub.s32 1, %s7
  %s10 = scalar_select 0, %s9, %s7
  $region1: #{tpu_custom_call.1} parent=0
    #allocation3 [shape = 'u8[16384]{0}', space=vmem, size = 0x4000, scoped, tag = 'output window, operand 0']
    #allocation4 [shape = 's32[2]{0}', space=sflag, size = 0x8, scoped, tag = 'scoped memory for tpu_custom_call.1']
    #allocation5 [shape = 'u8[16384]{0}', space=vmem, size = 0x4000, scoped, tag = 'output window, operand 1']
    #allocation6 [shape = 's32[2]{0}', space=sflag, size = 0x8, scoped, tag = 'scoped memory for tpu_custom_call.1']
    %11 = vsyncpa [#allocation4], 0
    %s12 = scalar_lea.sflag [#allocation4], 1
    %13 = vsyncpa %s12, 0
    %14 = vsyncpa [#allocation6], 0
    %s15 = scalar_lea.sflag [#allocation6], 1
    %16 = vsyncpa %s15, 0
    loop: start=0, step=1, limit=18
    $region2: #{tpu_custom_call.1} parent=1 // loop_pre_header
      _
    $region3: #{tpu_custom_call.1} parent=1 // loop_header
      %s18 = sphi 0, %s22
      %p19 = scmp.ge.s32.totalorder %s18, 18
      %s25 = sphi 0, %s37
      %s26 = sphi 0, %s33
      %s27 = sphi 0, %s25
      %s28 = sphi 0, %s26
      %s29 = sphi 0, %s27
      %s30 = sphi 0, %s28
      %s40 = sphi 0, %s42
      %s43 = sphi 0, %s40
      %s44 = sphi 0, %s43
      %s60 = sphi 0, %s44
      %s66 = sphi 0, %s68
      %s69 = sphi 0, %s66
      %s70 = sphi 0, %s69
      %s86 = sphi 0, %s70
      %s92 = sphi 0, %s94
      %s95 = sphi 0, %s92
      %s96 = sphi 0, %s95
      %s112 = sphi 0, %s96
      %s116 = sphi 0, %s116
      %s118 = sphi 0, %s116
      %s119 = sphi 0, %s118
      %s133 = sphi 0, %s119
      %s139 = sphi 0, %s141
      %s142 = sphi 0, %s139
      %s143 = sphi 0, %s142
      %s159 = sphi 0, %s143
      %s165 = sphi 0, %s167
      %s168 = sphi 0, %s165
      %s169 = sphi 0, %s168
      %s185 = sphi 0, %s169
    $region4: #{tpu_custom_call.1} parent=1 // loop_header_branch
      %21 = sbr.rel (%p19) target = $region8
    $region5: #{tpu_custom_call.1} parent=1 // loop_body
      %s23 = ssub.s32 %s18, 1
      %s24 = ssub.s32 %s18, 2
      %s31 = sadd.s32 1, %s26
      %p32 = scmp.ge.s32.totalorder %s31, 8
      %s33 = scalar_select %p32, 0, %s31
      %s34 = sadd.s32 1, %s25
      %s35 = scalar_select %p32, %s34, %s25
      %p36 = scmp.ge.s32.totalorder %s35, 2
      %s37 = scalar_select %p36, 0, %s35
      %s38 = ssub.s32 %s25, %s37
      %p39 = scmp.eq.s32.totalorder %s38, 0
      %s41 = sadd.s32 %s40, 1
      %s42 = scalar_select %p39, %s40, %s41
      %p45 = pneg %p39
      %p46 = scmp.eq.s32.totalorder %s18, 15
      %p47 = por %p45, %p46
      %p48 = scmp.ne.s32.totalorder %s40, %s43
      %p49 = scmp.eq.s32.totalorder %s18, 0
      %p50 = por %p48, %p49
      %p51 = scmp.ne.s32.totalorder %s40, %s43
      %p52 = scmp.eq.s32.totalorder %s23, 15
      %p53 = por %p51, %p52
      %p54 = scmp.ne.s32.totalorder %s43, %s44
      %p55 = scmp.eq.s32.totalorder %s23, 0
      %p56 = por %p54, %p55
      %p57 = scmp.ne.s32.totalorder %s43, %s44
      %p58 = scmp.eq.s32.totalorder %s24, 15
      %p59 = por %p57, %p58
      %p61 = scmp.ne.s32.totalorder %s44, %s60
      %p62 = scmp.eq.s32.totalorder %s24, 0
      %p63 = por %p61, %p62
      %s64 = ssub.s32 %s26, %s33
      %p65 = scmp.eq.s32.totalorder %s64, 0
      %s67 = sadd.s32 %s66, 1
      %s68 = scalar_select %p65, %s66, %s67
      %p71 = pneg %p65
      %p72 = scmp.eq.s32.totalorder %s18, 15
      %p73 = por %p71, %p72
      %p74 = scmp.ne.s32.totalorder %s66, %s69
      %p75 = scmp.eq.s32.totalorder %s18, 0
      %p76 = por %p74, %p75
      %p77 = scmp.ne.s32.totalorder %s66, %s69
      %p78 = scmp.eq.s32.totalorder %s23, 15
      %p79 = por %p77, %p78
      %p80 = scmp.ne.s32.totalorder %s69, %s70
      %p81 = scmp.eq.s32.totalorder %s23, 0
      %p82 = por %p80, %p81
      %p83 = scmp.ne.s32.totalorder %s69, %s70
      %p84 = scmp.eq.s32.totalorder %s24, 15
      %p85 = por %p83, %p84
      %p87 = scmp.ne.s32.totalorder %s70, %s86
      %p88 = scmp.eq.s32.totalorder %s24, 0
      %p89 = por %p87, %p88
      %s90 = ssub.s32 %s26, %s33
      %p91 = scmp.eq.s32.totalorder %s90, 0
      %s93 = sadd.s32 %s92, 1
      %s94 = scalar_select %p91, %s92, %s93
      %p97 = pneg %p91
      %p98 = scmp.eq.s32.totalorder %s18, 15
      %p99 = por %p97, %p98
      %p100 = scmp.ne.s32.totalorder %s92, %s95
      %p101 = scmp.eq.s32.totalorder %s18, 0
      %p102 = por %p100, %p101
      %p103 = scmp.ne.s32.totalorder %s92, %s95
      %p104 = scmp.eq.s32.totalorder %s23, 15
      %p105 = por %p103, %p104
      %p106 = scmp.ne.s32.totalorder %s95, %s96
      %p107 = scmp.eq.s32.totalorder %s23, 0
      %p108 = por %p106, %p107
      %p109 = scmp.ne.s32.totalorder %s95, %s96
      %p110 = scmp.eq.s32.totalorder %s24, 15
      %p111 = por %p109, %p110
      %p113 = scmp.ne.s32.totalorder %s96, %s112
      %p114 = scmp.eq.s32.totalorder %s24, 0
      %p115 = por %p113, %p114
      %s117 = sadd.s32 %s116, 1
      %p120 = scmp.eq.s32.totalorder %s18, 15
      %p121 = scmp.ne.s32.totalorder %s116, %s118
      %p122 = scmp.eq.s32.totalorder %s18, 0
      %p123 = por %p121, %p122
      %p124 = scmp.ne.s32.totalorder %s116, %s118
      %p125 = scmp.eq.s32.totalorder %s23, 15
      %p126 = por %p124, %p125
      %p127 = scmp.ne.s32.totalorder %s118, %s119
      %p128 = scmp.eq.s32.totalorder %s23, 0
      %p129 = por %p127, %p128
      %p130 = scmp.ne.s32.totalorder %s118, %s119
      %p131 = scmp.eq.s32.totalorder %s24, 15
      %p132 = por %p130, %p131
      %p134 = scmp.ne.s32.totalorder %s119, %s133
      %p135 = scmp.eq.s32.totalorder %s24, 0
      %p136 = por %p134, %p135
      %s137 = ssub.s32 %s25, %s37
      %p138 = scmp.eq.s32.totalorder %s137, 0
      %s140 = sadd.s32 %s139, 1
      %s141 = scalar_select %p138, %s139, %s140
      %p144 = pneg %p138
      %p145 = scmp.eq.s32.totalorder %s18, 15
      %p146 = por %p144, %p145
      %p147 = scmp.ne.s32.totalorder %s139, %s142
      %p148 = scmp.eq.s32.totalorder %s18, 0
      %p149 = por %p147, %p148
      %p150 = scmp.ne.s32.totalorder %s139, %s142
      %p151 = scmp.eq.s32.totalorder %s23, 15
      %p152 = por %p150, %p151
      %p153 = scmp.ne.s32.totalorder %s142, %s143
      %p154 = scmp.eq.s32.totalorder %s23, 0
      %p155 = por %p153, %p154
      %p156 = scmp.ne.s32.totalorder %s142, %s143
      %p157 = scmp.eq.s32.totalorder %s24, 15
      %p158 = por %p156, %p157
      %p160 = scmp.ne.s32.totalorder %s143, %s159
      %p161 = scmp.eq.s32.totalorder %s24, 0
      %p162 = por %p160, %p161
      %s163 = ssub.s32 %s25, %s37
      %p164 = scmp.eq.s32.totalorder %s163, 0
      %s166 = sadd.s32 %s165, 1
      %s167 = scalar_select %p164, %s165, %s166
      %p170 = pneg %p164
      %p171 = scmp.eq.s32.totalorder %s18, 15
      %p172 = por %p170, %p171
      %p173 = scmp.ne.s32.totalorder %s165, %s168
      %p174 = scmp.eq.s32.totalorder %s18, 0
      %p175 = por %p173, %p174
      %p176 = scmp.ne.s32.totalorder %s165, %s168
      %p177 = scmp.eq.s32.totalorder %s23, 15
      %p178 = por %p176, %p177
      %p179 = scmp.ne.s32.totalorder %s168, %s169
      %p180 = scmp.eq.s32.totalorder %s23, 0
      %p181 = por %p179, %p180
      %p182 = scmp.ne.s32.totalorder %s168, %s169
      %p183 = scmp.eq.s32.totalorder %s24, 15
      %p184 = por %p182, %p183
      %p186 = scmp.ne.s32.totalorder %s169, %s185
      %p187 = scmp.eq.s32.totalorder %s24, 0
      %p188 = por %p186, %p187
      %p189 = scmp.le.s32.totalorder 1, %s18
      %p190 = scmp.lt.s32.totalorder %s18, 17
      %p191 = pnand %p189, %p190
      %p192 = pneg %p191
      // Predicated region
      $region9: #{tpu_custom_call.1} parent=5 // pred_check
        _
      $region10: #{tpu_custom_call.1} parent=5 // pred_check_branch
        %194 = sbr.rel (%p191) target = $region12
      $region11: #{tpu_custom_call.1} parent=5 // pred_region
        %s195 = ssub.s32 %s18, 1
        // Predicated region
        $region13: #{tpu_custom_call.1} parent=11 // pred_check
          %p196 = pneg %p129
        $region14: #{tpu_custom_call.1} parent=11 // pred_check_branch
          %198 = sbr.rel (%p196) target = $region16
        $region15: #{tpu_custom_call.1} parent=11 // pred_region
          _
        $region16: #{tpu_custom_call.1} parent=11 // pred_fallthru
          _
      $region12: #{tpu_custom_call.1} parent=5 // pred_fallthru
        _
      %p199 = scmp.lt.s32.totalorder %s18, 16
      // Predicated region
      $region17: #{tpu_custom_call.1} parent=5 // pred_check
        %p200 = pneg %p199
      $region18: #{tpu_custom_call.1} parent=5 // pred_check_branch
        %202 = sbr.rel (%p200) target = $region20
      $region19: #{tpu_custom_call.1} parent=5 // pred_region
        // Predicated region
        $region21: #{tpu_custom_call.1} parent=19 // pred_check
          %p203 = pneg %p50
        $region22: #{tpu_custom_call.1} parent=19 // pred_check_branch
          %205 = sbr.rel (%p203) target = $region24
        $region23: #{tpu_custom_call.1} parent=19 // pred_region
          %p206 = scmp.lt.s32.totalorder %s25, 1
          %s207 = scalar_select %p206, %s25, 1
          %s208 = smul.addr %s207, 2
          %s209 = smul.addr %s208, 8
          %s210 = scalar_lea.vmem %s0, %s209
        $region24: #{tpu_custom_call.1} parent=19 // pred_fallthru
          _
        // Predicated region
        $region25: #{tpu_custom_call.1} parent=19 // pred_check
          %p211 = pneg %p76
        $region26: #{tpu_custom_call.1} parent=19 // pred_check_branch
          %213 = sbr.rel (%p211) target = $region28
        $region27: #{tpu_custom_call.1} parent=19 // pred_region
          %p214 = scmp.lt.s32.totalorder %s26, 7
          %s215 = scalar_select %p214, %s26, 7
          %s216 = smul.addr %s215, 8
          %s217 = smul.addr %s216, 4
          %s218 = scalar_lea.vmem %s1, %s217
        $region28: #{tpu_custom_call.1} parent=19 // pred_fallthru
          _
        // Predicated region
        $region29: #{tpu_custom_call.1} parent=19 // pred_check
          %p219 = pneg %p102
        $region30: #{tpu_custom_call.1} parent=19 // pred_check_branch
          %221 = sbr.rel (%p219) target = $region32
        $region31: #{tpu_custom_call.1} parent=19 // pred_region
          %p222 = scmp.lt.s32.totalorder %s26, 7
          %s223 = scalar_select %p222, %s26, 7
          %s224 = smul.addr %s223, 4
          %s225 = scalar_lea.vmem %s2, %s224
        $region32: #{tpu_custom_call.1} parent=19 // pred_fallthru
          _
      $region20: #{tpu_custom_call.1} parent=5 // pred_fallthru
        _
      %p226 = scmp.le.s32.totalorder 1, %s18
      %p227 = scmp.lt.s32.totalorder %s18, 17
      %p228 = pnand %p226, %p227
      %p229 = pneg %p228
      // Predicated region
      $region33: #{tpu_custom_call.1} parent=5 // pred_check
        _
      $region34: #{tpu_custom_call.1} parent=5 // pred_check_branch
        %231 = sbr.rel (%p228) target = $region36
      $region35: #{tpu_custom_call.1} parent=5 // pred_region
        %s232 = ssub.s32 %s18, 1
        %p233 = scmp.lt.s32.totalorder %s27, 1
        %s234 = scalar_select %p233, %s27, 1
        %s235 = smul.addr %s234, 2
        %s236 = smul.addr %s235, 8
        %s237 = scalar_lea.vmem %s0, %s236
        %p238 = pneg %p56
        %p239 = pneg %p53
        %p240 = scmp.lt.s32.totalorder %s28, 7
        %s241 = scalar_select %p240, %s28, 7
        %s242 = smul.addr %s241, 8
        %s243 = smul.addr %s242, 4
        %s244 = scalar_lea.vmem %s1, %s243
        %p245 = pneg %p82
        %p246 = pneg %p79
        %p247 = scmp.lt.s32.totalorder %s28, 7
        %s248 = scalar_select %p247, %s28, 7
        %s249 = smul.addr %s248, 4
        %s250 = scalar_lea.vmem %s2, %s249
        %p251 = pneg %p108
        %p252 = pneg %p105
        %p253 = pneg %p129
        %p254 = pneg %p126
        %p255 = pneg %p155
        %p256 = pneg %p152
        %s257 = sand.u32 %s142, 1
        %s258 = scalar_lea.sflag [#allocation4], %s257
        %s259 = sand.u32 %s142, 1
        %s260 = smul.addr %s259, 16
        %s261 = scalar_lea.vmem [#allocation3], %s260
        %p262 = pneg %p181
        %p263 = pneg %p178
        %s264 = sand.u32 %s168, 1
        %s265 = scalar_lea.sflag [#allocation6], %s264
        %s266 = sand.u32 %s168, 1
        %s267 = smul.addr %s266, 16
        %s268 = scalar_lea.vmem [#allocation5], %s267
        %p269 = scmp.lt.s32.totalorder %s27, 1
        %s270 = scalar_select %p269, %s27, 1
        %s271 = smul.addr %s270, 2
        %s272 = smul.addr %s271, 8
        %s273 = scalar_lea.vmem %s0, %s272
        %p274 = scmp.lt.s32.totalorder %s28, 7
        %s275 = scalar_select %p274, %s28, 7
        %s276 = smul.addr %s275, 8
        %s277 = smul.addr %s276, 4
        %s278 = scalar_lea.vmem %s1, %s277
        %p279 = scmp.lt.s32.totalorder %s28, 7
        %s280 = scalar_select %p279, %s28, 7
        %s281 = smul.addr %s280, 4
        %s282 = scalar_lea.vmem %s2, %s281
        %v284 = vld [vmem:[%s273] sm:$0xff]
        %v285 = vld [vmem:[%s273 + $0x8] sm:$0xff]
        %v286 = vpack.c.bf16 %v285, %v284
        %v287 = vld [vmem:[%s278] sm:$0xf]
        %v288 = vld [vmem:[%s278 + $0x4] sm:$0xf]
        %v289 = vld [vmem:[%s278 + $0x8] sm:$0xf]
        %v290 = vld [vmem:[%s278 + $0xc] sm:$0xf]
        %v291 = vld [vmem:[%s278 + $0x10] sm:$0xf]
        %v292 = vld [vmem:[%s278 + $0x14] sm:$0xf]
        %v293 = vld [vmem:[%s278 + $0x18] sm:$0xf]
        %v294 = vld [vmem:[%s278 + $0x1c] sm:$0xf]
        %v303 = vunpack.c.l.b16 %v287
        %v304 = vunpack.c.l.b16 %v288
        %v305 = vunpack.c.l.b16 %v289
        %v306 = vunpack.c.l.b16 %v290
        %v307 = vunpack.c.l.b16 %v291
        %v308 = vunpack.c.l.b16 %v292
        %v309 = vunpack.c.l.b16 %v293
        %v310 = vunpack.c.l.b16 %v294
        %v311 = vpack.c.b16 %v304, %v303
        %v312 = vpack.c.b16 %v306, %v305
        %v313 = vpack.c.b16 %v308, %v307
        %v314 = vpack.c.b16 %v310, %v309
        %vm319 = vcmask 523264
        %v321 = vsel %vm319, %v286, 0
        %323 = vmatprep.subr.bf16.mxu0 0
        %324 = vmatpush1.bf16.msra.mxu0 0
        %325 = vmatprep.subr.bf16.mxu0 0
        %326 = vmatpush1.bf16.msra.mxu0 0
        %327 = vmatprep.subr.bf16.mxu0 0
        %328 = vmatpush1.bf16.msra.mxu0 0
        %329 = vmatprep.subr.bf16.mxu0 0
        %330 = vmatpush1.bf16.msra.mxu0 0
        %331 = vmatprep.subr.bf16.mxu0 0
        %332 = vmatpush1.bf16.msra.mxu0 %v314
        %333 = vmatprep.subr.bf16.mxu0 0
        %334 = vmatpush1.bf16.msra.mxu0 %v313
        %335 = vmatprep.subr.bf16.mxu0 0
        %336 = vmatpush1.bf16.msra.mxu0 %v312
        %337 = vmatprep.subr.bf16.mxu0 0
        %338 = vmatpush1.bf16.msra.mxu0 %v311
        %339 = vmatprep.subr.bf16.mxu0 0
        %340 = vmatpush2.bf16.msra.mxu0 0
        %341 = vmatprep.subr.bf16.mxu0 0
        %342 = vmatpush2.bf16.msra.mxu0 0
        %343 = vmatprep.subr.bf16.mxu0 0
        %344 = vmatpush2.bf16.msra.mxu0 0
        %345 = vmatprep.subr.bf16.mxu0 0
        %346 = vmatpush2.bf16.msra.mxu0 0
        %347 = vmatprep.subr.bf16.mxu0 0
        %348 = vmatpush2.bf16.msra.mxu0 0
        %349 = vmatprep.subr.bf16.mxu0 0
        %350 = vmatpush2.bf16.msra.mxu0 0
        %351 = vmatprep.subr.bf16.mxu0 0
        %352 = vmatpush2.bf16.msra.mxu0 0
        %353 = vmatprep.subr.bf16.mxu0 0
        %354 = vmatpush2.bf16.msra.mxu0 0
        %355 = vmatprep.mubr.bf16.mxu0 0
        %356 = vmatmul.mubr.bf16.gmra.mxu0 %v321
        %v357 = vpop.f32.mrf.mxu0
        %v358 = vadd.f32 0.0, %v357
        %v359 = vpop.f32.mrf.mxu0
        %v360 = vpop.f32.mrf.mxu0
        %v361 = vadd.f32 0.0, %v360
        %v362 = vpop.f32.mrf.mxu0
        %363 = vdwg.mxu0
        %v364 = vpack.c.bf16 %v361, %v358
        %366 = vrot.lane.b32.xlu0 %v364, 120
        %v367 = vpop.permute.xlu0 %366
        %vm368 = vcmask 64512
        %v370 = vsel %vm368, %v364, 0
        %v373 = vsel %vm368, %v367, 0
        %375 = vmatprep.subr.bf16.mxu0 0
        %376 = vmatpush1.bf16.xpose.msra.mxu0 0
        %377 = vmatprep.subr.bf16.mxu0 0
        %378 = vmatpush1.bf16.xpose.msra.mxu0 0
        %379 = vmatprep.subr.bf16.mxu0 0
        %380 = vmatpush1.bf16.xpose.msra.mxu0 0
        %381 = vmatprep.subr.bf16.mxu0 0
        %382 = vmatpush1.bf16.xpose.msra.mxu0 0
        %383 = vmatprep.subr.bf16.mxu0 0
        %384 = vmatpush1.bf16.xpose.msra.mxu0 0
        %385 = vmatprep.subr.bf16.mxu0 0
        %386 = vmatpush1.bf16.xpose.msra.mxu0 0
        %387 = vmatprep.subr.bf16.mxu0 0
        %388 = vmatpush1.bf16.xpose.msra.mxu0 0
        %389 = vmatprep.subr.bf16.mxu0 0
        %390 = vmatpush1.bf16.xpose.msra.mxu0 %v373
        %391 = vmatprep.subr.bf16.mxu0 0
        %392 = vmatpush2.bf16.xpose.msra.mxu0 0
        %393 = vmatprep.subr.bf16.mxu0 0
        %394 = vmatpush2.bf16.xpose.msra.mxu0 0
        %395 = vmatprep.subr.bf16.mxu0 0
        %396 = vmatpush2.bf16.xpose.msra.mxu0 0
        %397 = vmatprep.subr.bf16.mxu0 0
        %398 = vmatpush2.bf16.xpose.msra.mxu0 0
        %399 = vmatprep.subr.bf16.mxu0 0
        %400 = vmatpush2.bf16.xpose.msra.mxu0 0
        %401 = vmatprep.subr.bf16.mxu0 0
        %402 = vmatpush2.bf16.xpose.msra.mxu0 0
        %403 = vmatprep.subr.bf16.mxu0 0
        %404 = vmatpush2.bf16.xpose.msra.mxu0 0
        %405 = vmatprep.subr.bf16.mxu0 0
        %406 = vmatpush2.bf16.xpose.msra.mxu0 0
        %407 = vmatprep.mubr.bf16.mxu0 0
        %408 = vmatmul.mubr.bf16.gmra.mxu0 %v370
        %v409 = vpop.f32.mrf.mxu0
        %v410 = vadd.f32 0.0, %v409
        %v411 = vpop.f32.mrf.mxu0
        %v412 = vpop.f32.mrf.mxu0
        %v413 = vadd.f32 0.0, %v412
        %v414 = vpop.f32.mrf.mxu0
        %415 = vdwg.mxu0
        %vm416 = vcmask 130048
        %v417 = vsel %vm416, %v410, -inf
        %418 = vmax.xlane.f32.xlu0 %v417
        %v419 = vpop.xlane.xlu0 %418
        %v420 = vsel %vm416, %v413, -inf
        %421 = vmax.xlane.f32.xlu0 %v420
        %v422 = vpop.xlane.xlu0 %421
        %v423 = vsub.f32 %v410, %v419
        %v424 = vsub.f32 %v413, %v422
        %v425 = vmul.f32 %v423, 1.442695
        %v426 = vpow.pop %v425
        %v427 = vmul.f32 %v424, 1.442695
        %v428 = vpow.pop %v427
        %v429 = vsel %vm416, %v426, 0.0
        %430 = vadd.xlane.f32.xlu0 %v429
        %v431 = vpop.xlane.xlu0 %430
        %v432 = vsel %vm416, %v428, 0.0
        %433 = vadd.xlane.f32.xlu0 %v432
        %v434 = vpop.xlane.xlu0 %433
        %v435 = vrcp.pop %v431
        %v436 = vrcp.pop %v434
        %v437 = vmul.f32 %v426, %v435
        %v438 = vmul.f32 %v428, %v436
        %p439 = scmp.eq.s32.totalorder %s28, 0
        // Predicated region
        $region37: #{tpu_custom_call.1} parent=35 // pred_check
          %p440 = pneg %p439
        $region38: #{tpu_custom_call.1} parent=35 // pred_check_branch
          %442 = sbr.rel (%p440) target = $region40
        $region39: #{tpu_custom_call.1} parent=35 // pred_region
          %443 = vst.msk [vmem:[%s268] sm:$0xff] %vm416, %v437
          %444 = vst.msk [vmem:[%s268 + $0x8] sm:$0xff] %vm416, %v438
        $region40: #{tpu_custom_call.1} parent=35 // pred_fallthru
          _
        %p445 = scmp.gt.s32.totalorder %s28, 0
        // Predicated region
        $region41: #{tpu_custom_call.1} parent=35 // pred_check
          %p446 = pneg %p445
        $region42: #{tpu_custom_call.1} parent=35 // pred_check_branch
          %448 = sbr.rel (%p446) target = $region44
        $region43: #{tpu_custom_call.1} parent=35 // pred_region
          %v449 = vld [vmem:[%s268] sm:$0xff]
          %v450 = vld [vmem:[%s268 + $0x8] sm:$0xff]
          %v451 = vadd.f32 %v449, %v437
          %v452 = vadd.f32 %v450, %v438
          %453 = vst.msk [vmem:[%s268] sm:$0xff] %vm416, %v451
          %454 = vst.msk [vmem:[%s268 + $0x8] sm:$0xff] %vm416, %v452
        $region44: #{tpu_custom_call.1} parent=35 // pred_fallthru
          _
        %v455 = vpack.c.bf16 %v438, %v437
        %456 = vrot.lane.b32.xlu0 %v364, 112
        %v457 = vpop.permute.xlu0 %456
        %v460 = vsel %vm416, %v455, 0
        %462 = vmatprep.subr.bf16.mxu0 0
        %463 = vmatpush1.bf16.msra.mxu0 0
        %464 = vmatprep.subr.bf16.mxu0 0
        %465 = vmatpush1.bf16.msra.mxu0 0
        %466 = vmatprep.subr.bf16.mxu0 0
        %467 = vmatpush1.bf16.msra.mxu0 0
        %468 = vmatprep.subr.bf16.mxu0 0
        %469 = vmatpush1.bf16.msra.mxu0 0
        %470 = vmatprep.subr.bf16.mxu0 0
        %471 = vmatpush1.bf16.msra.mxu0 0
        %472 = vmatprep.subr.bf16.mxu0 0
        %473 = vmatpush1.bf16.msra.mxu0 0
        %474 = vmatprep.subr.bf16.mxu0 0
        %475 = vmatpush1.bf16.msra.mxu0 0
        %476 = vmatprep.subr.bf16.mxu0 0
        %477 = vmatpush1.bf16.msra.mxu0 %v457
        %478 = vmatprep.subr.bf16.mxu0 0
        %479 = vmatpush2.bf16.msra.mxu0 0
        %480 = vmatprep.subr.bf16.mxu0 0
        %481 = vmatpush2.bf16.msra.mxu0 0
        %482 = vmatprep.subr.bf16.mxu0 0
        %483 = vmatpush2.bf16.msra.mxu0 0
        %484 = vmatprep.subr.bf16.mxu0 0
        %485 = vmatpush2.bf16.msra.mxu0 0
        %486 = vmatprep.subr.bf16.mxu0 0
        %487 = vmatpush2.bf16.msra.mxu0 0
        %488 = vmatprep.subr.bf16.mxu0 0
        %489 = vmatpush2.bf16.msra.mxu0 0
        %490 = vmatprep.subr.bf16.mxu0 0
        %491 = vmatpush2.bf16.msra.mxu0 0
        %492 = vmatprep.subr.bf16.mxu0 0
        %493 = vmatpush2.bf16.msra.mxu0 0
        %494 = vmatprep.mubr.bf16.mxu0 0
        %495 = vmatmul.mubr.bf16.gmra.mxu0 %v460
        %v496 = vpop.f32.mrf.mxu0
        %v497 = vadd.f32 0.0, %v496
        %v498 = vpop.f32.mrf.mxu0
        %v499 = vpop.f32.mrf.mxu0
        %v500 = vadd.f32 0.0, %v499
        %v501 = vpop.f32.mrf.mxu0
        %502 = vdwg.mxu0
        %v503 = vpack.c.bf16 %v500, %v497
        %v504 = vld [vmem:[%s282] sm:$0xf]
        %v506 = vsel %vm368, %v503, 0
        %vm508 = vcmask 1043456
        %v510 = vsel %vm508, %v504, 0
        %512 = vmatprep.subr.bf16.mxu0 0
        %513 = vmatpush1.bf16.msra.mxu0 0
        %514 = vmatprep.subr.bf16.mxu0 0
        %515 = vmatpush1.bf16.msra.mxu0 0
        %516 = vmatprep.subr.bf16.mxu0 0
        %517 = vmatpush1.bf16.msra.mxu0 0
        %518 = vmatprep.subr.bf16.mxu0 0
        %519 = vmatpush1.bf16.msra.mxu0 0
        %520 = vmatprep.subr.bf16.mxu0 0
        %521 = vmatpush1.bf16.msra.mxu0 0
        %522 = vmatprep.subr.bf16.mxu0 0
        %523 = vmatpush1.bf16.msra.mxu0 0
        %524 = vmatprep.subr.bf16.mxu0 0
        %525 = vmatpush1.bf16.msra.mxu0 0
        %526 = vmatprep.subr.bf16.mxu0 0
        %527 = vmatpush1.bf16.msra.mxu0 %v510
        %528 = vmatprep.subr.bf16.mxu0 0
        %529 = vmatpush2.bf16.msra.mxu0 0
        %530 = vmatprep.subr.bf16.mxu0 0
        %531 = vmatpush2.bf16.msra.mxu0 0
        %532 = vmatprep.subr.bf16.mxu0 0
        %533 = vmatpush2.bf16.msra.mxu0 0
        %534 = vmatprep.subr.bf16.mxu0 0
        %535 = vmatpush2.bf16.msra.mxu0 0
        %536 = vmatprep.subr.bf16.mxu0 0
        %537 = vmatpush2.bf16.msra.mxu0 0
        %538 = vmatprep.subr.bf16.mxu0 0
        %539 = vmatpush2.bf16.msra.mxu0 0
        %540 = vmatprep.subr.bf16.mxu0 0
        %541 = vmatpush2.bf16.msra.mxu0 0
        %542 = vmatprep.subr.bf16.mxu0 0
        %543 = vmatpush2.bf16.msra.mxu0 0
        %544 = vmatprep.mubr.bf16.mxu0 0
        %545 = vmatmul.mubr.bf16.gmra.mxu0 %v506
        %v546 = vpop.f32.mrf.mxu0
        %v547 = vadd.f32 0.0, %v546
        %v548 = vpop.f32.mrf.mxu0
        %v549 = vpop.f32.mrf.mxu0
        %v550 = vadd.f32 0.0, %v549
        %v551 = vpop.f32.mrf.mxu0
        %552 = vdwg.mxu0
        // Predicated region
        $region45: #{tpu_custom_call.1} parent=35 // pred_check
          %p553 = pneg %p439
        $region46: #{tpu_custom_call.1} parent=35 // pred_check_branch
          %555 = sbr.rel (%p553) target = $region48
        $region47: #{tpu_custom_call.1} parent=35 // pred_region
          %556 = vst.msk [vmem:[#allocation2] sm:$0xff] %vm319, %v547
          %557 = vst.msk [vmem:[#allocation2 + $0x8] sm:$0xff] %vm319, %v550
        $region48: #{tpu_custom_call.1} parent=35 // pred_fallthru
          _
        // Predicated region
        $region49: #{tpu_custom_call.1} parent=35 // pred_check
          %p558 = pneg %p445
        $region50: #{tpu_custom_call.1} parent=35 // pred_check_branch
          %560 = sbr.rel (%p558) target = $region52
        $region51: #{tpu_custom_call.1} parent=35 // pred_region
          %v561 = vld [vmem:[#allocation2] sm:$0xff]
          %v562 = vld [vmem:[#allocation2 + $0x8] sm:$0xff]
          %v563 = vadd.f32 %v561, %v547
          %v564 = vadd.f32 %v562, %v550
          %565 = vst.msk [vmem:[#allocation2] sm:$0xff] %vm319, %v563
          %566 = vst.msk [vmem:[#allocation2 + $0x8] sm:$0xff] %vm319, %v564
        $region52: #{tpu_custom_call.1} parent=35 // pred_fallthru
          _
        %p567 = scmp.eq.s32.totalorder %s28, 7
        // Predicated region
        $region53: #{tpu_custom_call.1} parent=35 // pred_check
          %p568 = pneg %p567
        $region54: #{tpu_custom_call.1} parent=35 // pred_check_branch
          %570 = sbr.rel (%p568) target = $region56
        $region55: #{tpu_custom_call.1} parent=35 // pred_region
          %v571 = vld [vmem:[%s268] sm:$0xff]
          %v572 = vld [vmem:[%s268 + $0x8] sm:$0xff]
          %v573 = vmul.f32 %v571, 0.125
          %v574 = vmul.f32 %v572, 0.125
          %575 = vst.msk [vmem:[%s268] sm:$0xff] %vm416, %v573
          %576 = vst.msk [vmem:[%s268 + $0x8] sm:$0xff] %vm416, %v574
          %v577 = vld [vmem:[#allocation2] sm:$0xff]
          %v578 = vld [vmem:[#allocation2 + $0x8] sm:$0xff]
          %v579 = vld [vmem:[%s3] sm:$0x1]
          %v581 = vlaneseq
          %v582 = vshrl.u32 %v581, 7
          %v583 = vsub.s32 0, %v582
          %v584 = vrot.slane %v579, %v583
          %v586 = vadd.f32 %v577, %v584
          %v587 = vadd.f32 %v578, %v584
          %588 = vst.msk [vmem:[%s261] sm:$0xff] %vm319, %v586
          %589 = vst.msk [vmem:[%s261 + $0x8] sm:$0xff] %vm319, %v587
        $region56: #{tpu_custom_call.1} parent=35 // pred_fallthru
          _
        %s590 = sand.u32 %s142, 1
        %s591 = scalar_lea.sflag [#allocation4], %s590
        %s592 = sand.u32 %s142, 1
        %s593 = smul.addr %s592, 16
        %s594 = scalar_lea.vmem [#allocation3], %s593
        %s595 = sand.u32 %s168, 1
        %s596 = scalar_lea.sflag [#allocation6], %s595
        %s597 = sand.u32 %s168, 1
        %s598 = smul.addr %s597, 16
        %s599 = scalar_lea.vmem [#allocation5], %s598
        // Predicated region
        $region57: #{tpu_custom_call.1} parent=35 // pred_check
          %p600 = pneg %p152
        $region58: #{tpu_custom_call.1} parent=35 // pred_check_branch
          %602 = sbr.rel (%p600) target = $region60
        $region59: #{tpu_custom_call.1} parent=35 // pred_region
          %s604 = ssub.s32 256, 256
          %605 = vsyncadd %s591, %s604
          %s606 = smul.addr %s27, 2
          %s607 = smul.addr %s606, 128
          %s608 = scalar_lea.hbm %s4, %s607
          %s609 = sshll.u32 %s594, 4
          %s610 = int_to_ptr.vmem [resolvable:$true] %s609
          %615 = dma.vmem_to_hbm [thread:$0]  %s610, 256, %s608, %s591, 128, 128, 8
        $region60: #{tpu_custom_call.1} parent=35 // pred_fallthru
          _
        // Predicated region
        $region61: #{tpu_custom_call.1} parent=35 // pred_check
          %p616 = pneg %p178
        $region62: #{tpu_custom_call.1} parent=35 // pred_check_branch
          %618 = sbr.rel (%p616) target = $region64
        $region63: #{tpu_custom_call.1} parent=35 // pred_region
          %s620 = ssub.s32 256, 256
          %621 = vsyncadd %s596, %s620
          %s622 = smul.addr %s27, 2
          %s623 = smul.addr %s622, 128
          %s624 = scalar_lea.hbm %s5, %s623
          %s625 = sshll.u32 %s599, 4
          %s626 = int_to_ptr.vmem [resolvable:$true] %s625
          %631 = dma.vmem_to_hbm [thread:$0]  %s626, 256, %s624, %s596, 128, 128, 8
        $region64: #{tpu_custom_call.1} parent=35 // pred_fallthru
          _
      $region36: #{tpu_custom_call.1} parent=5 // pred_fallthru
        _
      %p632 = scmp.le.s32.totalorder 2, %s18
      // Predicated region
      $region65: #{tpu_custom_call.1} parent=5 // pred_check
        %p633 = pneg %p632
      $region66: #{tpu_custom_call.1} parent=5 // pred_check_branch
        %635 = sbr.rel (%p633) target = $region68
      $region67: #{tpu_custom_call.1} parent=5 // pred_region
        %s636 = ssub.s32 %s18, 2
        // Predicated region
        $region69: #{tpu_custom_call.1} parent=67 // pred_check
          %p637 = pneg %p158
        $region70: #{tpu_custom_call.1} parent=67 // pred_check_branch
          %639 = sbr.rel (%p637) target = $region72
        $region71: #{tpu_custom_call.1} parent=67 // pred_region
          %s640 = sand.u32 %s143, 1
          %s641 = scalar_lea.sflag [#allocation4], %s640
          %s642 = sand.u32 %s143, 1
          %s643 = smul.addr %s642, 16
          %s644 = scalar_lea.vmem [#allocation3], %s643
          %645 = dma.done %s641, 256
        $region72: #{tpu_custom_call.1} parent=67 // pred_fallthru
          _
        // Predicated region
        $region73: #{tpu_custom_call.1} parent=67 // pred_check
          %p646 = pneg %p184
        $region74: #{tpu_custom_call.1} parent=67 // pred_check_branch
          %648 = sbr.rel (%p646) target = $region76
        $region75: #{tpu_custom_call.1} parent=67 // pred_region
          %s649 = sand.u32 %s169, 1
          %s650 = scalar_lea.sflag [#allocation6], %s649
          %s651 = sand.u32 %s169, 1
          %s652 = smul.addr %s651, 16
          %s653 = scalar_lea.vmem [#allocation5], %s652
          %654 = dma.done %s650, 256
        $region76: #{tpu_custom_call.1} parent=67 // pred_fallthru
          _
      $region68: #{tpu_custom_call.1} parent=5 // pred_fallthru
        _
    $region6: #{tpu_custom_call.1} parent=1 // loop_footer
      %s22 = sadd.s32 1, %s18
    $region7: #{tpu_custom_call.1} parent=1 // loop_footer_branch
      %17 = sbr.rel target = $region3
    $region8: #{tpu_custom_call.1} parent=1 // loop_exit
      _
    %655 = vsyncpa [#allocation4], 1
    %s656 = scalar_lea.sflag [#allocation4], 1
    %657 = vsyncpa %s656, 1
    %658 = vsyncpa [#allocation6], 1
    %s659 = scalar_lea.sflag [#allocation6], 1
    %660 = vsyncpa %s659, 1

</llo_original>
